<compile_context>
chip_gen: v7x
topology: tpu7x:2x2x1
jax: 0.10.0
libtpu: 0.0.40
codegen_flags: <defaults>
</compile_context>

<pallas_src>
import functools

import jax
import jax.numpy as jnp
from jax.experimental import pallas as pl
from jax.experimental.pallas import tpu as pltpu

MAX_GT_CONST = 0.003


def _flow_loss_kernel(pk_ref, fft_ref, loss_ref, *, H, W, Wp, max_gt_const):
    f32 = jnp.float32
    bf16 = jnp.bfloat16
    CWp = 2 * Wp

    pk = pk_ref[0]                     # (8, TP) packed per-pixel stream
    inp = pk[0:2, :]                   # predicted (backward) flow
    fbv = pk[2:4, :]                   # groundtruth backward flow
    xn = pk[4:5, :]                    # normalized base grid, x
    yn = pk[5:6, :]                    # normalized base grid, y
    TP = pk.shape[1]

    ffr = fft_ref[0]                   # (2*CWp, H) bf16: [hi planes ; lo planes]
    fft_hi = ffr[0:CWp, :]
    fft_lo = ffr[CWp:2 * CWp, :]

    # Backwarp sampling positions (normalize_flow=False: flow added directly to
    # the normalized grid), converted to pixel coords (align_corners=True).
    fbx = fbv[0:1, :]
    fby = fbv[1:2, :]
    ix = (xn + fbx + 1.0) * ((W - 1) * 0.5)
    iy = (yn + fby + 1.0) * ((H - 1) * 0.5)

    ix0f = jnp.floor(ix)
    iy0f = jnp.floor(iy)
    wx1 = ix - ix0f
    wy1 = iy - iy0f
    wx0 = 1.0 - wx1
    wy0 = 1.0 - wy1
    ix0 = ix0f.astype(jnp.int32)
    iy0 = iy0f.astype(jnp.int32)
    ix1 = ix0 + 1
    iy1 = iy0 + 1

    # grid_sample padding_mode='zeros': out-of-bounds corners get weight 0.
    wx0 = jnp.where((ix0 >= 0) & (ix0 <= W - 1), wx0, 0.0)
    wx1 = jnp.where((ix1 >= 0) & (ix1 <= W - 1), wx1, 0.0)
    wy0 = jnp.where((iy0 >= 0) & (iy0 <= H - 1), wy0, 0.0)
    wy1 = jnp.where((iy1 >= 0) & (iy1 <= H - 1), wy1, 0.0)

    ix0c = jnp.clip(ix0, 0, W - 1)
    ix1c = jnp.clip(ix1, 0, W - 1)
    iy0c = jnp.clip(iy0, 0, H - 1)
    iy1c = jnp.clip(iy1, 0, H - 1)

    # ---- stage 1: wy-weighted row gather on the MXU --------------------------
    # sel[h, p] = wy0[p]*(h == iy0[p]) + wy1[p]*(h == iy1[p])       (H, TP) f32
    h_iota = jax.lax.broadcasted_iota(jnp.int32, (H, TP), 0)
    sel = (wy0 * (h_iota == iy0c).astype(f32)
           + wy1 * (h_iota == iy1c).astype(f32))
    # f32 x f32 via explicit hi/lo bf16 split: 3 DEFAULT-precision MXU passes
    # accumulated in f32 (lo*lo dropped, ~2^-16 relative error on warped vals).
    sel_hi = sel.astype(bf16)
    sel_lo = (sel - sel_hi.astype(f32)).astype(bf16)
    rows = (jnp.dot(fft_hi, sel_hi, preferred_element_type=f32)
            + jnp.dot(fft_hi, sel_lo, preferred_element_type=f32)
            + jnp.dot(fft_lo, sel_hi, preferred_element_type=f32))   # (CWp, TP)

    # ---- stage 2: wx-weighted column pick on the VPU --------------------------
    w_iota = jax.lax.broadcasted_iota(jnp.int32, (Wp, TP), 0)
    colw = (wx0 * (w_iota == ix0c).astype(f32)
            + wx1 * (w_iota == ix1c).astype(f32))                    # (Wp, TP)
    warped_x = jnp.sum(rows[0:Wp, :] * colw, axis=0, keepdims=True)
    warped_y = jnp.sum(rows[Wp:2 * Wp, :] * colw, axis=0, keepdims=True)
    warped = jnp.concatenate([warped_x, warped_y], axis=0)           # (2, TP)

    # ---- consistency mask + masked L1 -----------------------------------------
    mask_valid = (jnp.abs(warped + fbv) < max_gt_const).astype(f32)
    loss_ref[0] = jnp.abs(inp - fbv) * mask_valid


def _working_set_bytes(TP, H, Wp):
    """Approximate live VMEM bytes per grid step (f32 unless noted)."""
    io = (2 * 8 + 2 * 2) * TP * 4            # packed input + loss output (double-buffered)
    fft = 2 * (4 * Wp * H) * 2               # stacked hi/lo bf16 planes, double-buffered
    sel = 2 * H * TP * 4                     # f32 selector + its bf16 hi/lo planes
    rows = 2 * Wp * TP * 4                   # gather result
    stage2 = 3 * Wp * TP * 4                 # colw + per-channel weighted products
    misc = 48 * TP * 4                       # (1, TP) temporaries
    return io + fft + sel + rows + stage2 + misc


def _pick_tile(P_pad, B, H, Wp, max_tile=2048):
    """Largest lane-dense pixel tile whose per-step working set fits VMEM."""
    try:
        vmem_cap = int(getattr(pltpu.get_tpu_info(), "vmem_capacity_bytes",
                               64 * 1024 * 1024))
    except Exception:
        vmem_cap = 64 * 1024 * 1024          # conservative (v7x-sized) fallback
    budget = int(vmem_cap * 0.6)

    tp_cap = min(max_tile, P_pad)
    if B == 1 and P_pad >= 256:
        # Guarantee >= 2 grid steps so both TensorCores of a 2-TC chip get work.
        tp_cap = min(tp_cap, P_pad // 2)
    tp = max((tp_cap // 128) * 128, 128)
    while tp > 128 and (P_pad % tp != 0 or _working_set_bytes(tp, H, Wp) > budget):
        tp -= 128
    T = P_pad // tp
    vmem_limit = int(min(vmem_cap * 0.875,
                         max(3 * _working_set_bytes(tp, H, Wp), 48 * 1024 * 1024)))
    return tp, T, vmem_limit


def flow_loss(input_flow, flow_fwd, flow_bwd,
              max_gt_const=MAX_GT_CONST, reduction='mean'):
    """Pallas-TPU FlowLoss forward. All flow tensors: (B, 2, H, W) float32."""
    B, C, H, W = input_flow.shape
    assert C == 2, "flow tensors must have 2 channels (x, y displacement)"
    assert H > 1 and W > 1, "degenerate spatial dims (H==1 or W==1) unsupported"
    f32 = jnp.float32
    bf16 = jnp.bfloat16
    P = H * W
    P_pad = ((P + 127) // 128) * 128          # lane-dense pixel axis
    Wp = ((W + 7) // 8) * 8                   # sublane-aligned row-gather slices

    inp_flat = input_flow.reshape(B, C, P).astype(f32)
    fb_flat = flow_bwd.reshape(B, C, P).astype(f32)

    # Grid-invariant normalized base grid (hoisted out of the kernel).
    jj = jnp.arange(W, dtype=f32)[None, :]
    ii = jnp.arange(H, dtype=f32)[:, None]
    xn = jnp.broadcast_to(2.0 * jj / (W - 1) - 1.0, (H, W)).reshape(1, P)
    yn = jnp.broadcast_to(2.0 * ii / (H - 1) - 1.0, (H, W)).reshape(1, P)
    base = jnp.broadcast_to(jnp.concatenate([xn, yn], axis=0)[None], (B, 2, P))

    # One sublane-dense per-pixel stream: [pred(2); flow_bwd(2); base(2); pad(2)].
    packed = jnp.concatenate(
        [inp_flat, fb_flat, base, jnp.zeros((B, 2, P), f32)], axis=1)   # (B, 8, P)
    if P_pad != P:
        packed = jnp.pad(packed, ((0, 0), (0, 0), (0, P_pad - P)))

    # fft[b, c*Wp + w, h] = flow_fwd[b, c, h, w] (zero-padded in w), split into
    # hi/lo bf16 planes stacked along rows: [hi(2*Wp) ; lo(2*Wp)].
    fft = jnp.transpose(flow_fwd.astype(f32), (0, 1, 3, 2))             # (B, C, W, H)
    if Wp != W:
        fft = jnp.pad(fft, ((0, 0), (0, 0), (0, Wp - W), (0, 0)))
    fft = fft.reshape(B, C * Wp, H)
    fft_hi = fft.astype(bf16)
    fft_lo = (fft - fft_hi.astype(f32)).astype(bf16)
    fft_split = jnp.concatenate([fft_hi, fft_lo], axis=1)               # (B, 2*C*Wp, H) bf16

    TP, T, vmem_limit = _pick_tile(P_pad, B, H, Wp)

    kernel = functools.partial(_flow_loss_kernel, H=H, W=W, Wp=Wp,
                               max_gt_const=max_gt_const)

    flops = B * T * (3 * 2 * (C * Wp) * H * TP + (H + 4 * Wp + 64) * TP)
    bytes_accessed = (4 * B * 8 * P_pad            # packed per-pixel stream
                      + 2 * B * 2 * C * Wp * H     # bf16 hi/lo forward-flow planes
                      + 4 * B * C * P_pad)         # loss map

    loss_map = pl.pallas_call(
        kernel,
        out_shape=jax.ShapeDtypeStruct((B, C, P_pad), f32),
        grid_spec=pltpu.PrefetchScalarGridSpec(
            num_scalar_prefetch=0,
            grid=(B, T),
            in_specs=[
                pl.BlockSpec((1, 8, TP), lambda b, t: (b, 0, t)),            # packed stream
                pl.BlockSpec((1, 2 * C * Wp, H), lambda b, t: (b, 0, 0)),    # fwd flow hi/lo
            ],
            out_specs=pl.BlockSpec((1, C, TP), lambda b, t: (b, 0, t)),
        ),
        compiler_params=pltpu.CompilerParams(
            dimension_semantics=("parallel", "parallel"),
            vmem_limit_bytes=vmem_limit),
        cost_estimate=pl.CostEstimate(
            flops=int(flops), transcendentals=0,
            bytes_accessed=int(bytes_accessed)),
    )(packed, fft_split)

    loss_map = loss_map[:, :, :P]
    if reduction == 'mean':
        # Matches the module: mean over ALL elements (not only mask-valid ones).
        return jnp.sum(loss_map) / (B * C * H * W)
    return loss_map.reshape(B, C, H, W)


# ---------------- pure-JAX reference (different code path: real gather) ------
def _ref_backwarp(x, flow):
    B, C, H, W = x.shape
    jj = jnp.arange(W, dtype=jnp.float32)[None, :]
    ii = jnp.arange(H, dtype=jnp.float32)[:, None]
    xn = 2.0 * jj / (W - 1) - 1.0
    yn = 2.0 * ii / (H - 1) - 1.0
    px = xn + flow[:, 0]
    py = yn + flow[:, 1]
    ix = (px + 1.0) * (W - 1) * 0.5
    iy = (py + 1.0) * (H - 1) * 0.5
    ix0 = jnp.floor(ix); iy0 = jnp.floor(iy)
    wx1 = ix - ix0; wy1 = iy - iy0
    ix0 = ix0.astype(jnp.int32); iy0 = iy0.astype(jnp.int32)
    ix1 = ix0 + 1; iy1 = iy0 + 1
    xf = x.reshape(B, C, H * W)
    out = jnp.zeros_like(x)
    for cx, cy, w in [(ix0, iy0, (1 - wx1) * (1 - wy1)),
                      (ix1, iy0, wx1 * (1 - wy1)),
                      (ix0, iy1, (1 - wx1) * wy1),
                      (ix1, iy1, wx1 * wy1)]:
        inb = (cx >= 0) & (cx <= W - 1) & (cy >= 0) & (cy <= H - 1)
        w = jnp.where(inb, w, 0.0)
        idx = jnp.clip(cy, 0, H - 1) * W + jnp.clip(cx, 0, W - 1)
        vals = jnp.take_along_axis(
            xf, jnp.broadcast_to(idx.reshape(B, 1, H * W), (B, C, H * W)), axis=2)
        out = out + w[:, None] * vals.reshape(B, C, H, W)
    return out


def _ref_flow_loss_map(input_flow, flow_fwd, flow_bwd, max_gt_const=MAX_GT_CONST):
    const_losses = jnp.abs(_ref_backwarp(flow_fwd, flow_bwd) + flow_bwd)
    mask_valid = (const_losses < max_gt_const).astype(jnp.float32)
    return jnp.abs(input_flow - flow_bwd) * mask_valid


if __name__ == "__main__":
    B, C, H, W = 2, 2, 16, 16
    key = jax.random.PRNGKey(0)
    k1, k2, k3, k4 = jax.random.split(key, 4)

    # Small flows in normalized-grid units; the fwd/bwd consistency residual is
    # built with a clear gap around max_gt_const (clusters at 0.0005 and 0.01)
    # so the mask is non-trivial yet insensitive to the ~1e-5 relative warp
    # error of the bf16 hi/lo-split gather.
    flow_bwd = 0.001 * jax.random.normal(k1, (B, C, H, W), dtype=jnp.float32)
    resid_sign = jnp.sign(jax.random.normal(k2, (B, C, H, W), dtype=jnp.float32))
    resid_mag = jnp.where(jax.random.uniform(k3, (B, C, H, W)) < 0.5, 0.0005, 0.01)
    flow_fwd = -flow_bwd + resid_sign * resid_mag
    pred_flow = 0.002 * jax.random.normal(k4, (B, C, H, W), dtype=jnp.float32)

    mean_out = jax.block_until_ready(
        flow_loss(pred_flow, flow_fwd, flow_bwd, reduction='mean'))
    map_out = jax.block_until_ready(
        flow_loss(pred_flow, flow_fwd, flow_bwd, reduction='none'))

    ref_map = _ref_flow_loss_map(pred_flow, flow_fwd, flow_bwd)
    ref_mean = jnp.mean(ref_map)

    assert jnp.allclose(mean_out, ref_mean, atol=1e-6, rtol=1e-5), (mean_out, ref_mean)
    assert jnp.allclose(map_out, ref_map, atol=1e-6, rtol=1e-5), \
        float(jnp.max(jnp.abs(map_out - ref_map)))

    print("KERNEL_OK")
</pallas_src>

<mosaic_0001>
module attributes {stable_mosaic.version = 11 : i64} {
  func.func @_flow_loss_kernel(%arg0: i32, %arg1: i32, %arg2: memref<1x8x256xf32, #tpu.memory_space<vmem>>, %arg3: memref<1x64x16xbf16, #tpu.memory_space<vmem>>, %arg4: memref<1x2x256xf32, #tpu.memory_space<vmem>>) attributes {dimension_semantics = [#tpu.dimension_semantics<parallel>, #tpu.dimension_semantics<parallel>], iteration_bounds = array<i64: 2, 1>, scalar_prefetch = 0 : i64, scratch_operands = 0 : i64, tpu.core_type = #tpu.core_type<tc>, window_params = [{transform_indices = @transform_0, window_bounds = array<i64: 1, 8, 256>}, {transform_indices = @transform_1, window_bounds = array<i64: 1, 64, 16>}, {transform_indices = @transform_2, window_bounds = array<i64: 1, 2, 256>}]} {
    %c0 = arith.constant 0 : index
    %c0_0 = arith.constant 0 : index
    %c0_1 = arith.constant 0 : index
    %0 = vector.load %arg2[%c0, %c0_0, %c0_1] : memref<1x8x256xf32, #tpu.memory_space<vmem>>, vector<1x8x256xf32>
    %1 = vector.shape_cast %0 : vector<1x8x256xf32> to vector<8x256xf32>
    %2 = vector.extract_strided_slice %1 {offsets = [0, 0], sizes = [2, 256], strides = [1, 1]} : vector<8x256xf32> to vector<2x256xf32>
    %3 = vector.extract_strided_slice %1 {offsets = [2, 0], sizes = [2, 256], strides = [1, 1]} : vector<8x256xf32> to vector<2x256xf32>
    %4 = vector.extract_strided_slice %1 {offsets = [4, 0], sizes = [1, 256], strides = [1, 1]} : vector<8x256xf32> to vector<1x256xf32>
    %5 = vector.extract_strided_slice %1 {offsets = [5, 0], sizes = [1, 256], strides = [1, 1]} : vector<8x256xf32> to vector<1x256xf32>
    %c0_2 = arith.constant 0 : index
    %c0_3 = arith.constant 0 : index
    %c0_4 = arith.constant 0 : index
    %6 = vector.load %arg3[%c0_2, %c0_3, %c0_4] : memref<1x64x16xbf16, #tpu.memory_space<vmem>>, vector<1x64x16xbf16>
    %7 = vector.shape_cast %6 : vector<1x64x16xbf16> to vector<64x16xbf16>
    %8 = vector.extract_strided_slice %7 {offsets = [0, 0], sizes = [32, 16], strides = [1, 1]} : vector<64x16xbf16> to vector<32x16xbf16>
    %9 = vector.extract_strided_slice %7 {offsets = [32, 0], sizes = [32, 16], strides = [1, 1]} : vector<64x16xbf16> to vector<32x16xbf16>
    %10 = vector.extract_strided_slice %3 {offsets = [0, 0], sizes = [1, 256], strides = [1, 1]} : vector<2x256xf32> to vector<1x256xf32>
    %11 = vector.extract_strided_slice %3 {offsets = [1, 0], sizes = [1, 256], strides = [1, 1]} : vector<2x256xf32> to vector<1x256xf32>
    %12 = arith.addf %4, %10 : vector<1x256xf32>
    %cst = arith.constant 1.000000e+00 : f32
    %13 = vector.broadcast %cst : f32 to vector<1x256xf32>
    %14 = arith.addf %12, %13 : vector<1x256xf32>
    %cst_5 = arith.constant 7.500000e+00 : f32
    %15 = vector.broadcast %cst_5 : f32 to vector<1x256xf32>
    %16 = arith.mulf %14, %15 : vector<1x256xf32>
    %17 = arith.addf %5, %11 : vector<1x256xf32>
    %cst_6 = arith.constant 1.000000e+00 : f32
    %18 = vector.broadcast %cst_6 : f32 to vector<1x256xf32>
    %19 = arith.addf %17, %18 : vector<1x256xf32>
    %cst_7 = arith.constant 7.500000e+00 : f32
    %20 = vector.broadcast %cst_7 : f32 to vector<1x256xf32>
    %21 = arith.mulf %19, %20 : vector<1x256xf32>
    %22 = math.floor %16 : vector<1x256xf32>
    %23 = math.floor %21 : vector<1x256xf32>
    %24 = arith.subf %16, %22 : vector<1x256xf32>
    %25 = arith.subf %21, %23 : vector<1x256xf32>
    %cst_8 = arith.constant 1.000000e+00 : f32
    %26 = vector.broadcast %cst_8 : f32 to vector<1x256xf32>
    %27 = arith.subf %26, %24 : vector<1x256xf32>
    %cst_9 = arith.constant 1.000000e+00 : f32
    %28 = vector.broadcast %cst_9 : f32 to vector<1x256xf32>
    %29 = arith.subf %28, %25 : vector<1x256xf32>
    %30 = arith.fptosi %22 : vector<1x256xf32> to vector<1x256xi32>
    %31 = arith.fptosi %23 : vector<1x256xf32> to vector<1x256xi32>
    %c1_i32 = arith.constant 1 : i32
    %32 = vector.broadcast %c1_i32 : i32 to vector<1x256xi32>
    %33 = arith.addi %30, %32 : vector<1x256xi32>
    %c1_i32_10 = arith.constant 1 : i32
    %34 = vector.broadcast %c1_i32_10 : i32 to vector<1x256xi32>
    %35 = arith.addi %31, %34 : vector<1x256xi32>
    %c0_i32 = arith.constant 0 : i32
    %36 = vector.broadcast %c0_i32 : i32 to vector<1x256xi32>
    %37 = arith.cmpi sge, %30, %36 : vector<1x256xi32>
    %c15_i32 = arith.constant 15 : i32
    %38 = vector.broadcast %c15_i32 : i32 to vector<1x256xi32>
    %39 = arith.cmpi sle, %30, %38 : vector<1x256xi32>
    %40 = arith.andi %37, %39 : vector<1x256xi1>
    %cst_11 = arith.constant 0.000000e+00 : f32
    %41 = vector.broadcast %cst_11 : f32 to vector<1x256xf32>
    %42 = arith.select %40, %27, %41 : vector<1x256xi1>, vector<1x256xf32>
    %c0_i32_12 = arith.constant 0 : i32
    %43 = vector.broadcast %c0_i32_12 : i32 to vector<1x256xi32>
    %44 = arith.cmpi sge, %33, %43 : vector<1x256xi32>
    %c15_i32_13 = arith.constant 15 : i32
    %45 = vector.broadcast %c15_i32_13 : i32 to vector<1x256xi32>
    %46 = arith.cmpi sle, %33, %45 : vector<1x256xi32>
    %47 = arith.andi %44, %46 : vector<1x256xi1>
    %cst_14 = arith.constant 0.000000e+00 : f32
    %48 = vector.broadcast %cst_14 : f32 to vector<1x256xf32>
    %49 = arith.select %47, %24, %48 : vector<1x256xi1>, vector<1x256xf32>
    %c0_i32_15 = arith.constant 0 : i32
    %50 = vector.broadcast %c0_i32_15 : i32 to vector<1x256xi32>
    %51 = arith.cmpi sge, %31, %50 : vector<1x256xi32>
    %c15_i32_16 = arith.constant 15 : i32
    %52 = vector.broadcast %c15_i32_16 : i32 to vector<1x256xi32>
    %53 = arith.cmpi sle, %31, %52 : vector<1x256xi32>
    %54 = arith.andi %51, %53 : vector<1x256xi1>
    %cst_17 = arith.constant 0.000000e+00 : f32
    %55 = vector.broadcast %cst_17 : f32 to vector<1x256xf32>
    %56 = arith.select %54, %29, %55 : vector<1x256xi1>, vector<1x256xf32>
    %c0_i32_18 = arith.constant 0 : i32
    %57 = vector.broadcast %c0_i32_18 : i32 to vector<1x256xi32>
    %58 = arith.cmpi sge, %35, %57 : vector<1x256xi32>
    %c15_i32_19 = arith.constant 15 : i32
    %59 = vector.broadcast %c15_i32_19 : i32 to vector<1x256xi32>
    %60 = arith.cmpi sle, %35, %59 : vector<1x256xi32>
    %61 = arith.andi %58, %60 : vector<1x256xi1>
    %cst_20 = arith.constant 0.000000e+00 : f32
    %62 = vector.broadcast %cst_20 : f32 to vector<1x256xf32>
    %63 = arith.select %61, %25, %62 : vector<1x256xi1>, vector<1x256xf32>
    %c0_i32_21 = arith.constant 0 : i32
    %c15_i32_22 = arith.constant 15 : i32
    %64 = vector.broadcast %c0_i32_21 : i32 to vector<1x256xi32>
    %65 = arith.maxsi %64, %30 : vector<1x256xi32>
    %66 = vector.broadcast %c15_i32_22 : i32 to vector<1x256xi32>
    %67 = arith.minsi %66, %65 : vector<1x256xi32>
    %c0_i32_23 = arith.constant 0 : i32
    %c15_i32_24 = arith.constant 15 : i32
    %68 = vector.broadcast %c0_i32_23 : i32 to vector<1x256xi32>
    %69 = arith.maxsi %68, %33 : vector<1x256xi32>
    %70 = vector.broadcast %c15_i32_24 : i32 to vector<1x256xi32>
    %71 = arith.minsi %70, %69 : vector<1x256xi32>
    %c0_i32_25 = arith.constant 0 : i32
    %c15_i32_26 = arith.constant 15 : i32
    %72 = vector.broadcast %c0_i32_25 : i32 to vector<1x256xi32>
    %73 = arith.maxsi %72, %31 : vector<1x256xi32>
    %74 = vector.broadcast %c15_i32_26 : i32 to vector<1x256xi32>
    %75 = arith.minsi %74, %73 : vector<1x256xi32>
    %c0_i32_27 = arith.constant 0 : i32
    %c15_i32_28 = arith.constant 15 : i32
    %76 = vector.broadcast %c0_i32_27 : i32 to vector<1x256xi32>
    %77 = arith.maxsi %76, %35 : vector<1x256xi32>
    %78 = vector.broadcast %c15_i32_28 : i32 to vector<1x256xi32>
    %79 = arith.minsi %78, %77 : vector<1x256xi32>
    %80 = tpu.iota {dimensions = array<i32: 0>} : vector<16x256xi32>
    %81 = vector.broadcast %75 : vector<1x256xi32> to vector<16x256xi32>
    %82 = arith.cmpi eq, %80, %81 : vector<16x256xi32>
    %83 = arith.extui %82 : vector<16x256xi1> to vector<16x256xi32>
    %84 = arith.sitofp %83 : vector<16x256xi32> to vector<16x256xf32>
    %85 = vector.broadcast %56 : vector<1x256xf32> to vector<16x256xf32>
    %86 = arith.mulf %85, %84 : vector<16x256xf32>
    %87 = vector.broadcast %79 : vector<1x256xi32> to vector<16x256xi32>
    %88 = arith.cmpi eq, %80, %87 : vector<16x256xi32>
    %89 = arith.extui %88 : vector<16x256xi1> to vector<16x256xi32>
    %90 = arith.sitofp %89 : vector<16x256xi32> to vector<16x256xf32>
    %91 = vector.broadcast %63 : vector<1x256xf32> to vector<16x256xf32>
    %92 = arith.mulf %91, %90 : vector<16x256xf32>
    %93 = arith.addf %86, %92 : vector<16x256xf32>
    %94 = arith.truncf %93 : vector<16x256xf32> to vector<16x256xbf16>
    %95 = arith.extf %94 : vector<16x256xbf16> to vector<16x256xf32>
    %96 = arith.subf %93, %95 : vector<16x256xf32>
    %97 = arith.truncf %96 : vector<16x256xf32> to vector<16x256xbf16>
    %cst_29 = arith.constant dense<0.000000e+00> : vector<32x256xf32>
    %98 = tpu.matmul %8, %94, %cst_29 {dimension_numbers = #tpu.dot_dimension_numbers<[1], [0], [0], [1], [0, 0, 1, 1], [], []>} : vector<32x16xbf16>, vector<16x256xbf16>, vector<32x256xf32> -> vector<32x256xf32>
    %cst_30 = arith.constant dense<0.000000e+00> : vector<32x256xf32>
    %99 = tpu.matmul %8, %97, %cst_30 {dimension_numbers = #tpu.dot_dimension_numbers<[1], [0], [0], [1], [0, 0, 1, 1], [], []>} : vector<32x16xbf16>, vector<16x256xbf16>, vector<32x256xf32> -> vector<32x256xf32>
    %100 = arith.addf %98, %99 : vector<32x256xf32>
    %cst_31 = arith.constant dense<0.000000e+00> : vector<32x256xf32>
    %101 = tpu.matmul %9, %94, %cst_31 {dimension_numbers = #tpu.dot_dimension_numbers<[1], [0], [0], [1], [0, 0, 1, 1], [], []>} : vector<32x16xbf16>, vector<16x256xbf16>, vector<32x256xf32> -> vector<32x256xf32>
    %102 = arith.addf %100, %101 : vector<32x256xf32>
    %103 = tpu.iota {dimensions = array<i32: 0>} : vector<16x256xi32>
    %104 = vector.broadcast %67 : vector<1x256xi32> to vector<16x256xi32>
    %105 = arith.cmpi eq, %103, %104 : vector<16x256xi32>
    %106 = arith.extui %105 : vector<16x256xi1> to vector<16x256xi32>
    %107 = arith.sitofp %106 : vector<16x256xi32> to vector<16x256xf32>
    %108 = vector.broadcast %42 : vector<1x256xf32> to vector<16x256xf32>
    %109 = arith.mulf %108, %107 : vector<16x256xf32>
    %110 = vector.broadcast %71 : vector<1x256xi32> to vector<16x256xi32>
    %111 = arith.cmpi eq, %103, %110 : vector<16x256xi32>
    %112 = arith.extui %111 : vector<16x256xi1> to vector<16x256xi32>
    %113 = arith.sitofp %112 : vector<16x256xi32> to vector<16x256xf32>
    %114 = vector.broadcast %49 : vector<1x256xf32> to vector<16x256xf32>
    %115 = arith.mulf %114, %113 : vector<16x256xf32>
    %116 = arith.addf %109, %115 : vector<16x256xf32>
    %117 = vector.extract_strided_slice %102 {offsets = [0, 0], sizes = [16, 256], strides = [1, 1]} : vector<32x256xf32> to vector<16x256xf32>
    %118 = arith.mulf %117, %116 : vector<16x256xf32>
    %cst_32 = arith.constant dense<0.000000e+00> : vector<256xf32>
    %119 = vector.multi_reduction <add>, %118, %cst_32 [0] : vector<16x256xf32> to vector<256xf32>
    %120 = vector.shape_cast %119 : vector<256xf32> to vector<1x256xf32>
    %121 = vector.extract_strided_slice %102 {offsets = [16, 0], sizes = [16, 256], strides = [1, 1]} : vector<32x256xf32> to vector<16x256xf32>
    %122 = arith.mulf %121, %116 : vector<16x256xf32>
    %cst_33 = arith.constant dense<0.000000e+00> : vector<256xf32>
    %123 = vector.multi_reduction <add>, %122, %cst_33 [0] : vector<16x256xf32> to vector<256xf32>
    %124 = vector.shape_cast %123 : vector<256xf32> to vector<1x256xf32>
    %125 = tpu.concatenate %120, %124 in 0 : vector<1x256xf32>, vector<1x256xf32> -> vector<2x256xf32>
    %126 = arith.addf %125, %3 : vector<2x256xf32>
    %127 = math.absf %126 : vector<2x256xf32>
    %cst_34 = arith.constant 3.000000e-03 : f32
    %128 = vector.broadcast %cst_34 : f32 to vector<2x256xf32>
    %129 = arith.cmpf olt, %127, %128 : vector<2x256xf32>
    %130 = arith.extui %129 : vector<2x256xi1> to vector<2x256xi32>
    %131 = arith.sitofp %130 : vector<2x256xi32> to vector<2x256xf32>
    %132 = arith.subf %2, %3 : vector<2x256xf32>
    %133 = math.absf %132 : vector<2x256xf32>
    %134 = arith.mulf %133, %131 : vector<2x256xf32>
    %c0_35 = arith.constant 0 : index
    %c0_36 = arith.constant 0 : index
    %c0_37 = arith.constant 0 : index
    %135 = vector.load %arg4[%c0_35, %c0_36, %c0_37] : memref<1x2x256xf32, #tpu.memory_space<vmem>>, vector<1x2x256xf32>
    %136 = vector.shape_cast %135 : vector<1x2x256xf32> to vector<2x256xf32>
    %137 = vector.shape_cast %134 : vector<2x256xf32> to vector<1x2x256xf32>
    tpu.vector_store %arg4[%c0_35, %c0_36, %c0_37], %137 {strides = array<i32>} : memref<1x2x256xf32, #tpu.memory_space<vmem>>, vector<1x2x256xf32>,
    return
  }
  func.func @transform_0(%arg0: i32, %arg1: i32) -> (i32, i32, i32) {
    %c0_i32 = arith.constant 0 : i32
    %c0_i32_0 = arith.constant 0 : i32
    return %arg0, %c0_i32, %arg1 : i32, i32, i32
  }
  func.func @transform_1(%arg0: i32, %arg1: i32) -> (i32, i32, i32) {
    %c0_i32 = arith.constant 0 : i32
    %c0_i32_0 = arith.constant 0 : i32
    %c0_i32_1 = arith.constant 0 : i32
    return %arg0, %c0_i32, %c0_i32_0 : i32, i32, i32
  }
  func.func @transform_2(%arg0: i32, %arg1: i32) -> (i32, i32, i32) {
    %c0_i32 = arith.constant 0 : i32
    %c0_i32_0 = arith.constant 0 : i32
    return %arg0, %c0_i32, %arg1 : i32, i32, i32
  }
}

</mosaic_0001>

<llo_original>
// kernel: tpu_custom_call.1
$region0: #{tpu_custom_call.1}
  #allocation0 [shape = 'u32[]', space=smem, size = 0x4, offset = 0x4, fixed_abs, tag = 'smem constant byte address 0x4 - core index']
  #allocation1 [shape = 'u32[144,128]{1,0:T(1,128)}', space=vmem, size = 0x12000, scoped, tag = 'internal scratch']
  %s0 = inlined_call_operand.vmem [shape: f32[2,8,256], index: 0, kind: input, shape index: {}]
  %s1 = inlined_call_operand.vmem [shape: bf16[2,64,16], index: 1, kind: input, shape index: {}]
  %s2 = inlined_call_operand.hbm [shape: f32[2,2,256], index: 2, kind: output, shape index: {}]
  %s3 = sld [smem:[#allocation0]]
  $region41: #{tpu_custom_call.1} parent=0
    _
  %s5 = ssub.s32 1, %s3
  %s6 = scalar_select 0, %s5, %s3
  $region1: #{tpu_custom_call.1} parent=0
    #allocation2 [shape = 'u8[4096]{0}', space=vmem, size = 0x1000, scoped, tag = 'output window, operand 0']
    #allocation3 [shape = 's32[2]{0}', space=sflag, size = 0x8, scoped, tag = 'scoped memory for tpu_custom_call.1']
    %7 = vsyncpa [#allocation3], 0
    %s8 = scalar_lea.sflag [#allocation3], 1
    %9 = vsyncpa %s8, 0
    loop: start=0, step=1, limit=4
    $region2: #{tpu_custom_call.1} parent=1 // loop_pre_header
      _
    $region3: #{tpu_custom_call.1} parent=1 // loop_header
      %s11 = sphi 0, %s15
      %p12 = scmp.ge.s32.totalorder %s11, 4
      %s18 = sphi 0, %s30
      %s19 = sphi 0, %s26
      %s20 = sphi 0, %s18
      %s21 = sphi 0, %s19
      %s22 = sphi 0, %s20
      %s23 = sphi 0, %s21
      %s35 = sphi 0, %s37
      %s38 = sphi 0, %s35
      %s39 = sphi 0, %s38
      %s55 = sphi 0, %s39
      %s61 = sphi 0, %s63
      %s64 = sphi 0, %s61
      %s65 = sphi 0, %s64
      %s81 = sphi 0, %s65
      %s89 = sphi 0, %s91
      %s92 = sphi 0, %s89
      %s93 = sphi 0, %s92
      %s109 = sphi 0, %s93
    $region4: #{tpu_custom_call.1} parent=1 // loop_header_branch
      %14 = sbr.rel (%p12) target = $region8
    $region5: #{tpu_custom_call.1} parent=1 // loop_body
      %s16 = ssub.s32 %s11, 1
      %s17 = ssub.s32 %s11, 2
      %s24 = sadd.s32 1, %s19
      %p25 = scmp.ge.s32.totalorder %s24, 1
      %s26 = scalar_select %p25, 0, %s24
      %s27 = sadd.s32 1, %s18
      %s28 = scalar_select %p25, %s27, %s18
      %p29 = scmp.ge.s32.totalorder %s28, 2
      %s30 = scalar_select %p29, 0, %s28
      %s31 = ssub.s32 %s18, %s30
      %s32 = ssub.s32 %s19, %s26
      %s33 = sor.u32 %s31, %s32
      %p34 = scmp.eq.s32.totalorder %s33, 0
      %s36 = sadd.s32 %s35, 1
      %s37 = scalar_select %p34, %s35, %s36
      %p40 = pneg %p34
      %p41 = scmp.eq.s32.totalorder %s11, 1
      %p42 = por %p40, %p41
      %p43 = scmp.ne.s32.totalorder %s35, %s38
      %p44 = scmp.eq.s32.totalorder %s11, 0
      %p45 = por %p43, %p44
      %p46 = scmp.ne.s32.totalorder %s35, %s38
      %p47 = scmp.eq.s32.totalorder %s16, 1
      %p48 = por %p46, %p47
      %p49 = scmp.ne.s32.totalorder %s38, %s39
      %p50 = scmp.eq.s32.totalorder %s16, 0
      %p51 = por %p49, %p50
      %p52 = scmp.ne.s32.totalorder %s38, %s39
      %p53 = scmp.eq.s32.totalorder %s17, 1
      %p54 = por %p52, %p53
      %p56 = scmp.ne.s32.totalorder %s39, %s55
      %p57 = scmp.eq.s32.totalorder %s17, 0
      %p58 = por %p56, %p57
      %s59 = ssub.s32 %s18, %s30
      %p60 = scmp.eq.s32.totalorder %s59, 0
      %s62 = sadd.s32 %s61, 1
      %s63 = scalar_select %p60, %s61, %s62
      %p66 = pneg %p60
      %p67 = scmp.eq.s32.totalorder %s11, 1
      %p68 = por %p66, %p67
      %p69 = scmp.ne.s32.totalorder %s61, %s64
      %p70 = scmp.eq.s32.totalorder %s11, 0
      %p71 = por %p69, %p70
      %p72 = scmp.ne.s32.totalorder %s61, %s64
      %p73 = scmp.eq.s32.totalorder %s16, 1
      %p74 = por %p72, %p73
      %p75 = scmp.ne.s32.totalorder %s64, %s65
      %p76 = scmp.eq.s32.totalorder %s16, 0
      %p77 = por %p75, %p76
      %p78 = scmp.ne.s32.totalorder %s64, %s65
      %p79 = scmp.eq.s32.totalorder %s17, 1
      %p80 = por %p78, %p79
      %p82 = scmp.ne.s32.totalorder %s65, %s81
      %p83 = scmp.eq.s32.totalorder %s17, 0
      %p84 = por %p82, %p83
      %s85 = ssub.s32 %s18, %s30
      %s86 = ssub.s32 %s19, %s26
      %s87 = sor.u32 %s85, %s86
      %p88 = scmp.eq.s32.totalorder %s87, 0
      %s90 = sadd.s32 %s89, 1
      %s91 = scalar_select %p88, %s89, %s90
      %p94 = pneg %p88
      %p95 = scmp.eq.s32.totalorder %s11, 1
      %p96 = por %p94, %p95
      %p97 = scmp.ne.s32.totalorder %s89, %s92
      %p98 = scmp.eq.s32.totalorder %s11, 0
      %p99 = por %p97, %p98
      %p100 = scmp.ne.s32.totalorder %s89, %s92
      %p101 = scmp.eq.s32.totalorder %s16, 1
      %p102 = por %p100, %p101
      %p103 = scmp.ne.s32.totalorder %s92, %s93
      %p104 = scmp.eq.s32.totalorder %s16, 0
      %p105 = por %p103, %p104
      %p106 = scmp.ne.s32.totalorder %s92, %s93
      %p107 = scmp.eq.s32.totalorder %s17, 1
      %p108 = por %p106, %p107
      %p110 = scmp.ne.s32.totalorder %s93, %s109
      %p111 = scmp.eq.s32.totalorder %s17, 0
      %p112 = por %p110, %p111
      %p113 = scmp.le.s32.totalorder 1, %s11
      %p114 = scmp.lt.s32.totalorder %s11, 3
      %p115 = pnand %p113, %p114
      %p116 = pneg %p115
      // Predicated region
      $region9: #{tpu_custom_call.1} parent=5 // pred_check
        _
      $region10: #{tpu_custom_call.1} parent=5 // pred_check_branch
        %118 = sbr.rel (%p115) target = $region12
      $region11: #{tpu_custom_call.1} parent=5 // pred_region
        %s119 = ssub.s32 %s11, 1
      $region12: #{tpu_custom_call.1} parent=5 // pred_fallthru
        _
      %p120 = scmp.lt.s32.totalorder %s11, 2
      // Predicated region
      $region13: #{tpu_custom_call.1} parent=5 // pred_check
        %p121 = pneg %p120
      $region14: #{tpu_custom_call.1} parent=5 // pred_check_branch
        %123 = sbr.rel (%p121) target = $region16
      $region15: #{tpu_custom_call.1} parent=5 // pred_region
        // Predicated region
        $region17: #{tpu_custom_call.1} parent=15 // pred_check
          %p124 = pneg %p45
        $region18: #{tpu_custom_call.1} parent=15 // pred_check_branch
          %126 = sbr.rel (%p124) target = $region20
        $region19: #{tpu_custom_call.1} parent=15 // pred_region
          %s127 = smul.u32 2, %s19
          %p128 = scmp.lt.s32.totalorder %s18, 1
          %s129 = scalar_select %p128, %s18, 1
          %p130 = scmp.lt.s32.totalorder %s127, 1
          %s131 = scalar_select %p130, %s127, 1
          %s132 = smul.addr %s129, 2
          %s133 = sadd.s32 %s131, %s132
          %s134 = smul.addr %s133, 8
          %s135 = scalar_lea.vmem %s0, %s134
          %s136 = smul.u32 2, %s19
        $region20: #{tpu_custom_call.1} parent=15 // pred_fallthru
          _
        // Predicated region
        $region21: #{tpu_custom_call.1} parent=15 // pred_check
          %p137 = pneg %p71
        $region22: #{tpu_custom_call.1} parent=15 // pred_check_branch
          %139 = sbr.rel (%p137) target = $region24
        $region23: #{tpu_custom_call.1} parent=15 // pred_region
          %p140 = scmp.lt.s32.totalorder %s18, 1
          %s141 = scalar_select %p140, %s18, 1
          %s142 = smul.addr %s141, 8
          %s143 = smul.addr %s142, 4
          %s144 = scalar_lea.vmem %s1, %s143
        $region24: #{tpu_custom_call.1} parent=15 // pred_fallthru
          _
      $region16: #{tpu_custom_call.1} parent=5 // pred_fallthru
        _
      %p145 = scmp.le.s32.totalorder 1, %s11
      %p146 = scmp.lt.s32.totalorder %s11, 3
      %p147 = pnand %p145, %p146
      %p148 = pneg %p147
      // Predicated region
      $region25: #{tpu_custom_call.1} parent=5 // pred_check
        _
      $region26: #{tpu_custom_call.1} parent=5 // pred_check_branch
        %150 = sbr.rel (%p147) target = $region28
      $region27: #{tpu_custom_call.1} parent=5 // pred_region
        %s151 = ssub.s32 %s11, 1
        %s152 = smul.u32 2, %s21
        %p153 = scmp.lt.s32.totalorder %s20, 1
        %s154 = scalar_select %p153, %s20, 1
        %p155 = scmp.lt.s32.totalorder %s152, 1
        %s156 = scalar_select %p155, %s152, 1
        %s157 = smul.addr %s154, 2
        %s158 = sadd.s32 %s156, %s157
        %s159 = smul.addr %s158, 8
        %s160 = scalar_lea.vmem %s0, %s159
        %p161 = pneg %p51
        %p162 = pneg %p48
        %p163 = scmp.lt.s32.totalorder %s20, 1
        %s164 = scalar_select %p163, %s20, 1
        %s165 = smul.addr %s164, 8
        %s166 = smul.addr %s165, 4
        %s167 = scalar_lea.vmem %s1, %s166
        %p168 = pneg %p77
        %p169 = pneg %p74
        %p170 = pneg %p105
        %p171 = pneg %p102
        %s172 = sand.u32 %s92, 1
        %s173 = scalar_lea.sflag [#allocation3], %s172
        %s174 = sand.u32 %s92, 1
        %s175 = smul.addr %s174, 4
        %s176 = scalar_lea.vmem [#allocation2], %s175
        %s177 = smul.u32 2, %s21
        %p178 = scmp.lt.s32.totalorder %s20, 1
        %s179 = scalar_select %p178, %s20, 1
        %p180 = scmp.lt.s32.totalorder %s177, 1
        %s181 = scalar_select %p180, %s177, 1
        %s182 = smul.addr %s179, 2
        %s183 = sadd.s32 %s181, %s182
        %s184 = smul.addr %s183, 8
        %s185 = scalar_lea.vmem %s0, %s184
        %s186 = smul.u32 2, %s21
        %p187 = scmp.lt.s32.totalorder %s20, 1
        %s188 = scalar_select %p187, %s20, 1
        %s189 = smul.addr %s188, 8
        %s190 = smul.addr %s189, 4
        %s191 = scalar_lea.vmem %s1, %s190
        %s192 = smul.u32 2, %s21
        %v194 = vld [vmem:[%s185] sm:$0xff]
        %v195 = vld [vmem:[%s185 + $0x8] sm:$0xff]
        %v196 = vld [vmem:[%s191] sm:$0xf]
        %v197 = vld [vmem:[%s191 + $0x4] sm:$0xf]
        %v198 = vld [vmem:[%s191 + $0x8] sm:$0xf]
        %v199 = vld [vmem:[%s191 + $0xc] sm:$0xf]
        %v200 = vld [vmem:[%s191 + $0x10] sm:$0xf]
        %v201 = vld [vmem:[%s191 + $0x14] sm:$0xf]
        %v202 = vld [vmem:[%s191 + $0x18] sm:$0xf]
        %v203 = vld [vmem:[%s191 + $0x1c] sm:$0xf]
        %v206 = vrot.slane %v194, 6
        %v207 = vrot.slane %v195, 6
        %v210 = vadd.f32 %v194, %v206
        %v211 = vadd.f32 %v195, %v207
        %v212 = vadd.f32 %v210, 1.0
        %v213 = vadd.f32 %v211, 1.0
        %v214 = vmul.f32 %v212, 7.5
        %v215 = vmul.f32 %v213, 7.5
        %v216 = vfloor.f32 %v214
        %v217 = vfloor.f32 %v215
        %v218 = vsub.f32 %v214, %v216
        %v219 = vsub.f32 %v215, %v217
        %v220 = vsub.f32 1.0, %v218
        %v221 = vsub.f32 1.0, %v219
        %v222 = vcvt.f32.s32.to.zero.pseudo %v216
        %v223 = vcvt.f32.s32.to.zero.pseudo %v217
        %v224 = vadd.s32 %v222, 1
        %v225 = vadd.s32 %v223, 1
        %vm226 = vcmp.ge.s32.totalorder %v222, 0
        %vm227 = vcmp.ge.s32.totalorder %v223, 0
        %vm228 = vcmp.le.s32.totalorder %v222, 15
        %vm229 = vcmp.le.s32.totalorder %v223, 15
        %vm230 = vmand %vm226, %vm228
        %vm231 = vmand %vm227, %vm229
        %v232 = vsel %vm230, %v220, 0.0
        %v233 = vsel %vm231, %v221, 0.0
        %vm234 = vcmp.ge.s32.totalorder %v224, 0
        %vm235 = vcmp.ge.s32.totalorder %v225, 0
        %vm236 = vcmp.le.s32.totalorder %v224, 15
        %vm237 = vcmp.le.s32.totalorder %v225, 15
        %vm238 = vmand %vm234, %vm236
        %vm239 = vmand %vm235, %vm237
        %v240 = vsel %vm238, %v218, 0.0
        %v241 = vsel %vm239, %v219, 0.0
        %vm242 = vcmp.gt.s32.totalorder %v222, 0
        %v243 = vsel %vm242, %v222, 0
        %vm244 = vcmp.gt.s32.totalorder %v223, 0
        %v245 = vsel %vm244, %v223, 0
        %vm246 = vcmp.lt.s32.totalorder %v243, 15
        %v247 = vsel %vm246, %v243, 15
        %vm248 = vcmp.lt.s32.totalorder %v245, 15
        %v249 = vsel %vm248, %v245, 15
        %vm250 = vcmp.gt.s32.totalorder %v224, 0
        %v251 = vsel %vm250, %v224, 0
        %vm252 = vcmp.gt.s32.totalorder %v225, 0
        %v253 = vsel %vm252, %v225, 0
        %vm254 = vcmp.lt.s32.totalorder %v251, 15
        %v255 = vsel %vm254, %v251, 15
        %vm256 = vcmp.lt.s32.totalorder %v253, 15
        %v257 = vsel %vm256, %v253, 15
        %v258 = vlaneseq
        %v259 = vshrl.u32 %v258, 7
        %v260 = vadd.s32 %v259, 8
        %v261 = vlaneseq
        %v262 = vshrl.u32 %v261, 7
        %v263 = vsub.s32 5, %v262
        %v264 = vrot.slane %v247, %v263
        %v265 = vlaneseq
        %v266 = vshrl.u32 %v265, 7
        %v267 = vsub.s32 5, %v266
        %v268 = vrot.slane %v249, %v267
        %vm269 = vcmp.eq.s32.totalorder %v259, %v264
        %vm270 = vcmp.eq.s32.totalorder %v259, %v268
        %vm271 = vcmp.eq.s32.totalorder %v260, %v264
        %vm272 = vcmp.eq.s32.totalorder %v260, %v268
        %v273 = vsel %vm269, 1, 0
        %v274 = vsel %vm270, 1, 0
        %v275 = vsel %vm271, 1, 0
        %v276 = vsel %vm272, 1, 0
        %v277 = vcvt.s32.f32 %v273
        %v278 = vcvt.s32.f32 %v274
        %v279 = vcvt.s32.f32 %v275
        %v280 = vcvt.s32.f32 %v276
        %v281 = vlaneseq
        %v282 = vshrl.u32 %v281, 7
        %v283 = vsub.s32 5, %v282
        %v284 = vrot.slane %v232, %v283
        %v285 = vlaneseq
        %v286 = vshrl.u32 %v285, 7
        %v287 = vsub.s32 5, %v286
        %v288 = vrot.slane %v233, %v287
        %v289 = vmul.f32 %v284, %v277
        %v290 = vmul.f32 %v288, %v278
        %v291 = vmul.f32 %v284, %v279
        %v292 = vmul.f32 %v288, %v280
        %v293 = vlaneseq
        %v294 = vshrl.u32 %v293, 7
        %v295 = vsub.s32 5, %v294
        %v296 = vrot.slane %v255, %v295
        %v297 = vlaneseq
        %v298 = vshrl.u32 %v297, 7
        %v299 = vsub.s32 5, %v298
        %v300 = vrot.slane %v257, %v299
        %vm301 = vcmp.eq.s32.totalorder %v259, %v296
        %vm302 = vcmp.eq.s32.totalorder %v259, %v300
        %vm303 = vcmp.eq.s32.totalorder %v260, %v296
        %vm304 = vcmp.eq.s32.totalorder %v260, %v300
        %v305 = vsel %vm301, 1, 0
        %v306 = vsel %vm302, 1, 0
        %v307 = vsel %vm303, 1, 0
        %v308 = vsel %vm304, 1, 0
        %v309 = vcvt.s32.f32 %v305
        %v310 = vcvt.s32.f32 %v306
        %v311 = vcvt.s32.f32 %v307
        %v312 = vcvt.s32.f32 %v308
        %v313 = vlaneseq
        %v314 = vshrl.u32 %v313, 7
        %v315 = vsub.s32 5, %v314
        %v316 = vrot.slane %v240, %v315
        %v317 = vlaneseq
        %v318 = vshrl.u32 %v317, 7
        %v319 = vsub.s32 5, %v318
        %v320 = vrot.slane %v241, %v319
        %v321 = vmul.f32 %v316, %v309
        %v322 = vmul.f32 %v320, %v310
        %v323 = vmul.f32 %v316, %v311
        %v324 = vmul.f32 %v320, %v312
        %v325 = vadd.f32 %v289, %v321
        %v326 = vadd.f32 %v290, %v322
        %v327 = vadd.f32 %v291, %v323
        %v328 = vadd.f32 %v292, %v324
        %v329 = vpack.c.bf16 %v327, %v325
        %v330 = vpack.c.bf16 %v328, %v326
        %v331 = vunpack.c.l.bf16 %v329
        %v332 = vunpack.c.l.bf16 %v330
        %v333 = vunpack.c.h.bf16 %v329
        %v334 = vunpack.c.h.bf16 %v330
        %v335 = vsub.f32 %v325, %v331
        %v336 = vsub.f32 %v326, %v332
        %v337 = vsub.f32 %v327, %v333
        %v338 = vsub.f32 %v328, %v334
        %v339 = vpack.c.bf16 %v337, %v335
        %v340 = vpack.c.bf16 %v338, %v336
        %v345 = vunpack.c.l.b16 %v196
        %v346 = vunpack.c.l.b16 %v197
        %v347 = vunpack.c.l.b16 %v198
        %v348 = vunpack.c.l.b16 %v199
        %v349 = vpack.c.b16 %v346, %v345
        %v350 = vpack.c.b16 %v348, %v347
        %vm351 = vcmask 130048
        %v353 = vsel %vm351, %v349, 0
        %v356 = vsel %vm351, %v350, 0
        %358 = vmatprep.subr.bf16.mxu0 %v340
        %359 = vmatpush1.bf16.msra.mxu0 %v339
        %360 = vmatprep.subr.bf16.mxu0 0
        %361 = vmatpush1.bf16.msra.mxu0 0
        %362 = vmatprep.subr.bf16.mxu0 0
        %363 = vmatpush1.bf16.msra.mxu0 0
        %364 = vmatprep.subr.bf16.mxu0 0
        %365 = vmatpush1.bf16.msra.mxu0 0
        %366 = vmatprep.subr.bf16.mxu0 0
        %367 = vmatpush1.bf16.msra.mxu0 0
        %368 = vmatprep.subr.bf16.mxu0 0
        %369 = vmatpush1.bf16.msra.mxu0 0
        %370 = vmatprep.subr.bf16.mxu0 0
        %371 = vmatpush1.bf16.msra.mxu0 0
        %372 = vmatprep.subr.bf16.mxu0 0
        %373 = vmatpush1.bf16.msra.mxu0 0
        %374 = vmatprep.subr.bf16.mxu0 0
        %375 = vmatpush1.bf16.msra.mxu0 0
        %376 = vmatprep.subr.bf16.mxu0 0
        %377 = vmatpush1.bf16.msra.mxu0 0
        %378 = vmatprep.subr.bf16.mxu0 0
        %379 = vmatpush1.bf16.msra.mxu0 0
        %380 = vmatprep.subr.bf16.mxu0 0
        %381 = vmatpush1.bf16.msra.mxu0 0
        %382 = vmatprep.subr.bf16.mxu0 0
        %383 = vmatpush1.bf16.msra.mxu0 0
        %384 = vmatprep.subr.bf16.mxu0 0
        %385 = vmatpush1.bf16.msra.mxu0 0
        %386 = vmatprep.subr.bf16.mxu0 0
        %387 = vmatpush1.bf16.msra.mxu0 0
        %388 = vmatprep.subr.bf16.mxu0 0
        %389 = vmatpush1.bf16.msra.mxu0 0
        %390 = vmatprep.mubr.bf16.mxu0 0
        %391 = vmatmul.mubr.bf16.gmra.mrb[0].mxu0 %v353
        %v392 = vpop.f32.mrb[0].mxu0
        %v393 = vadd.f32 0.0, %v392
        %v394 = vpop.f32.mrb[0].mxu0
        %v395 = vadd.f32 0.0, %v394
        %v396 = vpop.f32.mrb[0].mxu0
        %v397 = vadd.f32 0.0, %v396
        %v398 = vpop.f32.mrb[0].mxu0
        %v399 = vadd.f32 0.0, %v398
        %400 = vmatprep.mubr.bf16.mxu0 0
        %401 = vmatmul.mubr.bf16.gmra.mrb[0].mxu0 %v356
        %v402 = vpop.f32.mrb[0].mxu0
        %v403 = vadd.f32 0.0, %v402
        %v404 = vpop.f32.mrb[0].mxu0
        %v405 = vadd.f32 0.0, %v404
        %v406 = vpop.f32.mrb[0].mxu0
        %v407 = vadd.f32 0.0, %v406
        %v408 = vpop.f32.mrb[0].mxu0
        %v409 = vadd.f32 0.0, %v408
        %410 = vdwg.mxu0
        %411 = vmatprep.subr.bf16.mxu0 %v330
        %412 = vmatpush1.bf16.msra.mxu0 %v329
        %413 = vmatprep.subr.bf16.mxu0 0
        %414 = vmatpush1.bf16.msra.mxu0 0
        %415 = vmatprep.subr.bf16.mxu0 0
        %416 = vmatpush1.bf16.msra.mxu0 0
        %417 = vmatprep.subr.bf16.mxu0 0
        %418 = vmatpush1.bf16.msra.mxu0 0
        %419 = vmatprep.subr.bf16.mxu0 0
        %420 = vmatpush1.bf16.msra.mxu0 0
        %421 = vmatprep.subr.bf16.mxu0 0
        %422 = vmatpush1.bf16.msra.mxu0 0
        %423 = vmatprep.subr.bf16.mxu0 0
        %424 = vmatpush1.bf16.msra.mxu0 0
        %425 = vmatprep.subr.bf16.mxu0 0
        %426 = vmatpush1.bf16.msra.mxu0 0
        %427 = vmatprep.subr.bf16.mxu0 0
        %428 = vmatpush1.bf16.msra.mxu0 0
        %429 = vmatprep.subr.bf16.mxu0 0
        %430 = vmatpush1.bf16.msra.mxu0 0
        %431 = vmatprep.subr.bf16.mxu0 0
        %432 = vmatpush1.bf16.msra.mxu0 0
        %433 = vmatprep.subr.bf16.mxu0 0
        %434 = vmatpush1.bf16.msra.mxu0 0
        %435 = vmatprep.subr.bf16.mxu0 0
        %436 = vmatpush1.bf16.msra.mxu0 0
        %437 = vmatprep.subr.bf16.mxu0 0
        %438 = vmatpush1.bf16.msra.mxu0 0
        %439 = vmatprep.subr.bf16.mxu0 0
        %440 = vmatpush1.bf16.msra.mxu0 0
        %441 = vmatprep.subr.bf16.mxu0 0
        %442 = vmatpush1.bf16.msra.mxu0 0
        %443 = vmatprep.mubr.bf16.mxu0 0
        %444 = vmatmul.mubr.bf16.gmra.mrb[0].mxu0 %v353
        %v445 = vpop.f32.mrb[0].mxu0
        %v446 = vadd.f32 %v393, %v445
        %v447 = vpop.f32.mrb[0].mxu0
        %v448 = vadd.f32 %v395, %v447
        %v449 = vpop.f32.mrb[0].mxu0
        %v450 = vadd.f32 %v397, %v449
        %v451 = vpop.f32.mrb[0].mxu0
        %v452 = vadd.f32 %v399, %v451
        %453 = vmatprep.mubr.bf16.mxu0 0
        %454 = vmatmul.mubr.bf16.gmra.mrb[0].mxu0 %v356
        %v455 = vpop.f32.mrb[0].mxu0
        %v456 = vadd.f32 %v403, %v455
        %v457 = vpop.f32.mrb[0].mxu0
        %v458 = vadd.f32 %v405, %v457
        %v459 = vpop.f32.mrb[0].mxu0
        %v460 = vadd.f32 %v407, %v459
        %v461 = vpop.f32.mrb[0].mxu0
        %v462 = vadd.f32 %v409, %v461
        %463 = vdwg.mxu0
        %v468 = vunpack.c.l.b16 %v200
        %v469 = vunpack.c.l.b16 %v201
        %v470 = vunpack.c.l.b16 %v202
        %v471 = vunpack.c.l.b16 %v203
        %v472 = vpack.c.b16 %v469, %v468
        %v473 = vpack.c.b16 %v471, %v470
        %v475 = vsel %vm351, %v472, 0
        %v478 = vsel %vm351, %v473, 0
        %480 = vmatprep.subr.bf16.mxu0 %v330
        %481 = vmatpush1.bf16.msra.mxu0 %v329
        %482 = vmatprep.subr.bf16.mxu0 0
        %483 = vmatpush1.bf16.msra.mxu0 0
        %484 = vmatprep.subr.bf16.mxu0 0
        %485 = vmatpush1.bf16.msra.mxu0 0
        %486 = vmatprep.subr.bf16.mxu0 0
        %487 = vmatpush1.bf16.msra.mxu0 0
        %488 = vmatprep.subr.bf16.mxu0 0
        %489 = vmatpush1.bf16.msra.mxu0 0
        %490 = vmatprep.subr.bf16.mxu0 0
        %491 = vmatpush1.bf16.msra.mxu0 0
        %492 = vmatprep.subr.bf16.mxu0 0
        %493 = vmatpush1.bf16.msra.mxu0 0
        %494 = vmatprep.subr.bf16.mxu0 0
        %495 = vmatpush1.bf16.msra.mxu0 0
        %496 = vmatprep.subr.bf16.mxu0 0
        %497 = vmatpush1.bf16.msra.mxu0 0
        %498 = vmatprep.subr.bf16.mxu0 0
        %499 = vmatpush1.bf16.msra.mxu0 0
        %500 = vmatprep.subr.bf16.mxu0 0
        %501 = vmatpush1.bf16.msra.mxu0 0
        %502 = vmatprep.subr.bf16.mxu0 0
        %503 = vmatpush1.bf16.msra.mxu0 0
        %504 = vmatprep.subr.bf16.mxu0 0
        %505 = vmatpush1.bf16.msra.mxu0 0
        %506 = vmatprep.subr.bf16.mxu0 0
        %507 = vmatpush1.bf16.msra.mxu0 0
        %508 = vmatprep.subr.bf16.mxu0 0
        %509 = vmatpush1.bf16.msra.mxu0 0
        %510 = vmatprep.subr.bf16.mxu0 0
        %511 = vmatpush1.bf16.msra.mxu0 0
        %512 = vmatprep.mubr.bf16.mxu0 0
        %513 = vmatmul.mubr.bf16.gmra.mrb[0].mxu0 %v475
        %v514 = vpop.f32.mrb[0].mxu0
        %v515 = vadd.f32 0.0, %v514
        %v516 = vpop.f32.mrb[0].mxu0
        %v517 = vadd.f32 0.0, %v516
        %v518 = vpop.f32.mrb[0].mxu0
        %v519 = vadd.f32 0.0, %v518
        %v520 = vpop.f32.mrb[0].mxu0
        %v521 = vadd.f32 0.0, %v520
        %522 = vmatprep.mubr.bf16.mxu0 0
        %523 = vmatmul.mubr.bf16.gmra.mrb[0].mxu0 %v478
        %v524 = vpop.f32.mrb[0].mxu0
        %v525 = vadd.f32 0.0, %v524
        %v526 = vpop.f32.mrb[0].mxu0
        %v527 = vadd.f32 0.0, %v526
        %v528 = vpop.f32.mrb[0].mxu0
        %v529 = vadd.f32 0.0, %v528
        %v530 = vpop.f32.mrb[0].mxu0
        %v531 = vadd.f32 0.0, %v530
        %532 = vdwg.mxu0
        %v533 = vadd.f32 %v446, %v515
        %v534 = vadd.f32 %v448, %v517
        %v535 = vadd.f32 %v450, %v519
        %v536 = vadd.f32 %v452, %v521
        %v537 = vadd.f32 %v456, %v525
        %v538 = vadd.f32 %v458, %v527
        %v539 = vadd.f32 %v460, %v529
        %v540 = vadd.f32 %v462, %v531
        %v541 = vlaneseq
        %v542 = vshrl.u32 %v541, 7
        %v543 = vsub.s32 4, %v542
        %v544 = vrot.slane %v247, %v543
        %v545 = vlaneseq
        %v546 = vshrl.u32 %v545, 7
        %v547 = vsub.s32 4, %v546
        %v548 = vrot.slane %v249, %v547
        %vm549 = vcmp.eq.s32.totalorder %v259, %v544
        %vm550 = vcmp.eq.s32.totalorder %v259, %v548
        %vm551 = vcmp.eq.s32.totalorder %v260, %v544
        %vm552 = vcmp.eq.s32.totalorder %v260, %v548
        %v553 = vsel %vm549, 1, 0
        %v554 = vsel %vm550, 1, 0
        %v555 = vsel %vm551, 1, 0
        %v556 = vsel %vm552, 1, 0
        %v557 = vcvt.s32.f32 %v553
        %v558 = vcvt.s32.f32 %v554
        %v559 = vcvt.s32.f32 %v555
        %v560 = vcvt.s32.f32 %v556
        %v561 = vlaneseq
        %v562 = vshrl.u32 %v561, 7
        %v563 = vsub.s32 4, %v562
        %v564 = vrot.slane %v232, %v563
        %v565 = vlaneseq
        %v566 = vshrl.u32 %v565, 7
        %v567 = vsub.s32 4, %v566
        %v568 = vrot.slane %v233, %v567
        %v569 = vmul.f32 %v564, %v557
        %v570 = vmul.f32 %v568, %v558
        %v571 = vmul.f32 %v564, %v559
        %v572 = vmul.f32 %v568, %v560
        %v573 = vlaneseq
        %v574 = vshrl.u32 %v573, 7
        %v575 = vsub.s32 4, %v574
        %v576 = vrot.slane %v255, %v575
        %v577 = vlaneseq
        %v578 = vshrl.u32 %v577, 7
        %v579 = vsub.s32 4, %v578
        %v580 = vrot.slane %v257, %v579
        %vm581 = vcmp.eq.s32.totalorder %v259, %v576
        %vm582 = vcmp.eq.s32.totalorder %v259, %v580
        %vm583 = vcmp.eq.s32.totalorder %v260, %v576
        %vm584 = vcmp.eq.s32.totalorder %v260, %v580
        %v585 = vsel %vm581, 1, 0
        %v586 = vsel %vm582, 1, 0
        %v587 = vsel %vm583, 1, 0
        %v588 = vsel %vm584, 1, 0
        %v589 = vcvt.s32.f32 %v585
        %v590 = vcvt.s32.f32 %v586
        %v591 = vcvt.s32.f32 %v587
        %v592 = vcvt.s32.f32 %v588
        %v593 = vlaneseq
        %v594 = vshrl.u32 %v593, 7
        %v595 = vsub.s32 4, %v594
        %v596 = vrot.slane %v240, %v595
        %v597 = vlaneseq
        %v598 = vshrl.u32 %v597, 7
        %v599 = vsub.s32 4, %v598
        %v600 = vrot.slane %v241, %v599
        %v601 = vmul.f32 %v596, %v589
        %v602 = vmul.f32 %v600, %v590
        %v603 = vmul.f32 %v596, %v591
        %v604 = vmul.f32 %v600, %v592
        %v605 = vadd.f32 %v569, %v601
        %v606 = vadd.f32 %v570, %v602
        %v607 = vadd.f32 %v571, %v603
        %v608 = vadd.f32 %v572, %v604
        %v609 = vmul.f32 %v533, %v605
        %v610 = vmul.f32 %v534, %v606
        %v611 = vmul.f32 %v535, %v607
        %v612 = vmul.f32 %v536, %v608
        %v613 = vadd.f32 %v609, %v611
        %v614 = vrot.slane %v613, 4
        %v615 = vadd.f32 %v613, %v614
        %v616 = vrot.slane %v615, 2
        %v617 = vadd.f32 %v615, %v616
        %v618 = vrot.slane %v617, 1
        %v619 = vadd.f32 %v617, %v618
        %v620 = vadd.f32 %v610, %v612
        %v621 = vrot.slane %v620, 4
        %v622 = vadd.f32 %v620, %v621
        %v623 = vrot.slane %v622, 2
        %v624 = vadd.f32 %v622, %v623
        %v625 = vrot.slane %v624, 1
        %v626 = vadd.f32 %v624, %v625
        %v627 = vmul.f32 %v537, %v605
        %v628 = vmul.f32 %v538, %v606
        %v629 = vmul.f32 %v539, %v607
        %v630 = vmul.f32 %v540, %v608
        %v631 = vadd.f32 %v627, %v629
        %v632 = vrot.slane %v631, 4
        %v633 = vadd.f32 %v631, %v632
        %v634 = vrot.slane %v633, 2
        %v635 = vadd.f32 %v633, %v634
        %v636 = vrot.slane %v635, 1
        %v637 = vadd.f32 %v635, %v636
        %v638 = vadd.f32 %v628, %v630
        %v639 = vrot.slane %v638, 4
        %v640 = vadd.f32 %v638, %v639
        %v641 = vrot.slane %v640, 2
        %v642 = vadd.f32 %v640, %v641
        %v643 = vrot.slane %v642, 1
        %v644 = vadd.f32 %v642, %v643
        %vm645 = vcmask 1040384
        %v646 = vsel %vm645, %v619, %v637
        %v647 = vsel %vm645, %v626, %v644
        %v648 = vrot.slane %v194, 2
        %v649 = vrot.slane %v195, 2
        %v652 = vadd.f32 %v646, %v648
        %v653 = vadd.f32 %v647, %v649
        %v654 = vand.u32 2147483647, %v652
        %v655 = vand.u32 2147483647, %v653
        %vm656 = vcmp.lt.f32.partialorder %v654, 0.003
        %vm657 = vcmp.lt.f32.partialorder %v655, 0.003
        %v658 = vsel %vm656, 1, 0
        %v659 = vsel %vm657, 1, 0
        %v660 = vcvt.s32.f32 %v658
        %v661 = vcvt.s32.f32 %v659
        %v662 = vsub.f32 %v194, %v648
        %v663 = vsub.f32 %v195, %v649
        %v664 = vand.u32 2147483647, %v662
        %v665 = vand.u32 2147483647, %v663
        %v666 = vmul.f32 %v664, %v660
        %v667 = vmul.f32 %v665, %v661
        %v670 = vcombine.low %v666, %v667
        %v672 = vunpack.c.l.s4 1983009808
        %v673 = vunpack.c.0.s8 %v672
        %v674 = vlaneseq
        %v675 = vshrl.u32 %v674, 7
        %v676 = vsub.s32 %v673, %v675
        %v677 = vrot.slane %v670, %v676
        %679 = vst [vmem:[%s176] sm:$0xf] %v677
        %s680 = sand.u32 %s92, 1
        %s681 = scalar_lea.sflag [#allocation3], %s680
        %s682 = sand.u32 %s92, 1
        %s683 = smul.addr %s682, 4
        %s684 = scalar_lea.vmem [#allocation2], %s683
        // Predicated region
        $region29: #{tpu_custom_call.1} parent=27 // pred_check
          %p685 = pneg %p102
        $region30: #{tpu_custom_call.1} parent=27 // pred_check_branch
          %687 = sbr.rel (%p685) target = $region32
        $region31: #{tpu_custom_call.1} parent=27 // pred_region
          %s688 = smul.u32 2, %s21
          %s690 = ssub.s32 64, 64
          %691 = vsyncadd %s681, %s690
          %s692 = smul.addr %s20, 2
          %s693 = sadd.s32 %s688, %s692
          %s694 = smul.addr %s693, 32
          %s695 = scalar_lea.hbm %s2, %s694
          %s697 = sshll.u32 %s684, 4
          %s698 = int_to_ptr.vmem [resolvable:$true] %s697
          %700 = dma.vmem_to_hbm [thread:$0]  %s698, 64, %s695, %s681
        $region32: #{tpu_custom_call.1} parent=27 // pred_fallthru
          _
      $region28: #{tpu_custom_call.1} parent=5 // pred_fallthru
        _
      %p701 = scmp.le.s32.totalorder 2, %s11
      // Predicated region
      $region33: #{tpu_custom_call.1} parent=5 // pred_check
        %p702 = pneg %p701
      $region34: #{tpu_custom_call.1} parent=5 // pred_check_branch
        %704 = sbr.rel (%p702) target = $region36
      $region35: #{tpu_custom_call.1} parent=5 // pred_region
        %s705 = ssub.s32 %s11, 2
        // Predicated region
        $region37: #{tpu_custom_call.1} parent=35 // pred_check
          %p706 = pneg %p108
        $region38: #{tpu_custom_call.1} parent=35 // pred_check_branch
          %708 = sbr.rel (%p706) target = $region40
        $region39: #{tpu_custom_call.1} parent=35 // pred_region
          %s709 = sand.u32 %s93, 1
          %s710 = scalar_lea.sflag [#allocation3], %s709
          %s711 = sand.u32 %s93, 1
          %s712 = smul.addr %s711, 4
          %s713 = scalar_lea.vmem [#allocation2], %s712
          %714 = dma.done %s710, 64
        $region40: #{tpu_custom_call.1} parent=35 // pred_fallthru
          _
      $region36: #{tpu_custom_call.1} parent=5 // pred_fallthru
        _
    $region6: #{tpu_custom_call.1} parent=1 // loop_footer
      %s15 = sadd.s32 1, %s11
    $region7: #{tpu_custom_call.1} parent=1 // loop_footer_branch
      %10 = sbr.rel target = $region3
    $region8: #{tpu_custom_call.1} parent=1 // loop_exit
      _
    %715 = vsyncpa [#allocation3], 1
    %s716 = scalar_lea.sflag [#allocation3], 1
    %717 = vsyncpa %s716, 1

</llo_original>
